<compile_context>
chip_gen: v6e
topology: v6e:2x2x1
jax: 0.10.0
libtpu: 0.0.40
codegen_flags: <defaults>
</compile_context>

<pallas_src>
import jax
import jax.numpy as jnp
from jax.experimental import pallas as pl
from jax.experimental.pallas import tpu as pltpu


_SUB = 128  # rows per register-resident accumulator sub-chunk


def _agg_kernel(x_ref, len_ref, m_ref, o_ref):
    """One tile of packed node rows.

    x_ref   : (T, tile_r, W)  folded node features over time (W = G*F lanes)
    len_ref : (tile_r, W)     per-node valid length, replicated over its F lanes
    m_ref   : (W, W)          block-diagonal Wq matrix (score + lane broadcast)
    o_ref   : (tile_r, W)     aggregated output (folded layout)
    """
    T, tile_r, W = x_ref.shape
    m = m_ref[...].astype(jnp.float32)                       # loaded once

    def process(r0, sub):
        lens_b = len_ref[pl.ds(r0, sub), :]                  # (sub, W) int32, hoisted

        def t_body(t, acc):
            x_t = x_ref[t, pl.ds(r0, sub), :].astype(jnp.float32)    # (sub, W)
            # MXU: per-node score, already broadcast across that node's F lanes.
            s = jnp.dot(x_t, m, preferred_element_type=jnp.float32)  # (sub, W)
            # Select (not multiply) so non-finite values at padded time steps
            # (t >= length) can never leak into the accumulator.
            return acc + jnp.where(t < lens_b, s * x_t, 0.0)

        acc = jax.lax.fori_loop(0, T, t_body,
                                jnp.zeros((sub, W), jnp.float32),
                                unroll=(T <= 16))
        o_ref[pl.ds(r0, sub), :] = acc.astype(o_ref.dtype)

    n_full = tile_r // _SUB
    rem = tile_r % _SUB
    if n_full > 0:
        @pl.loop(0, n_full)
        def _(c):
            process(pl.multiple_of(c * _SUB, _SUB), _SUB)
    if rem:
        process(n_full * _SUB, rem)


def _vmem_limit_bytes():
    """Generation-aware scoped-VMEM limit (v7x has only 64 MiB physical)."""
    try:
        cap = int(pltpu.get_tpu_info().vmem_capacity_bytes)
    except Exception:
        cap = 64 * 1024 * 1024        # conservative (v7x-sized) fallback
    return min((cap * 3) // 4, 96 * 1024 * 1024)


def _choose_tile_rows(n_rows, T, W, in_itemsize, out_itemsize, budget_bytes):
    """Largest packed-row tile whose double-buffered blocks fit the budget."""
    # input + lens(int32) + output blocks, each double-buffered.
    per_row = 2 * W * (T * in_itemsize + 4 + out_itemsize)
    tile = max(8, budget_bytes // max(per_row, 1))
    if n_rows >= 16:
        # >= 2 grid steps so the parallel node axis shards across v7x's 2 TCs.
        half = -(-n_rows // 2)
        gran = _SUB if half >= _SUB else 8
        tile = min(tile, -(-half // gran) * gran)
    if tile >= n_rows:
        return n_rows                      # single full block (any size allowed)
    if tile >= _SUB:
        return (tile // _SUB) * _SUB       # multiple of the register sub-chunk
    return max(8, (tile // 8) * 8)         # sublane-aligned


def aggregate_nodes_temporal_feature(nodes_output, lengths, num_nodes_per_graph,
                                     wq, *, tile_rows=None):
    """nodes_output: (T_max, N_total, F) — layout the PyTorch code indexes.
       lengths: per-graph valid lengths (len == batch_size).
       num_nodes_per_graph: graph.ptr[1:] - graph.ptr[:-1].
       wq: (1, F) weight of nn.Linear(F, 1, bias=False).
    Returns (N_total, F)."""
    T, N, F = nodes_output.shape
    out_dtype = nodes_output.dtype

    # ---- lane folding: pack G nodes per 128-lane row -------------------------
    G = max(1, 128 // F) if F <= 128 else 1
    W = G * F
    N_pad = -(-N // G) * G

    node_len = jnp.repeat(jnp.asarray(lengths, jnp.int32),
                          jnp.asarray(num_nodes_per_graph, jnp.int32),
                          total_repeat_length=N)
    x = nodes_output
    if N_pad != N:
        # TODO(synk): only the rare N % G != 0 remainder pays this pad copy.
        x = jnp.pad(x, ((0, 0), (0, N_pad - N), (0, 0)))
        node_len = jnp.pad(node_len, (0, N_pad - N))
    Ng = N_pad // G

    x_f = x.reshape(T, Ng, W)                                  # free reshape
    lens_f = jnp.repeat(node_len, F).reshape(Ng, W)            # lane-dense mask source

    # Block-diagonal Wq: (x_f @ M)[r, l] = <x[node(l)], wq> broadcast over node(l)'s lanes.
    wq_vec = jnp.asarray(wq, jnp.float32).reshape(F)
    m_mat = jnp.kron(jnp.eye(G, dtype=jnp.float32),
                     jnp.tile(wq_vec[:, None], (1, F)))        # (W, W)

    vmem_limit = _vmem_limit_bytes()
    if tile_rows is None:
        tile_rows = _choose_tile_rows(Ng, T, W, x_f.dtype.itemsize,
                                      out_dtype.itemsize,
                                      budget_bytes=(vmem_limit * 17) // 20)

    grid = (pl.cdiv(Ng, tile_rows),)
    out_f = pl.pallas_call(
        _agg_kernel,
        out_shape=jax.ShapeDtypeStruct((Ng, W), out_dtype),
        grid_spec=pltpu.PrefetchScalarGridSpec(
            num_scalar_prefetch=0,
            grid=grid,
            in_specs=[
                pl.BlockSpec((T, tile_rows, W), lambda i: (0, i, 0)),
                pl.BlockSpec((tile_rows, W), lambda i: (i, 0)),
                pl.BlockSpec((W, W), lambda i: (0, 0)),
            ],
            out_specs=pl.BlockSpec((tile_rows, W), lambda i: (i, 0)),
        ),
        compiler_params=pltpu.CompilerParams(
            dimension_semantics=("parallel",),
            vmem_limit_bytes=vmem_limit,
        ),
    )(x_f, lens_f, m_mat)

    out = out_f.reshape(N_pad, F)
    return out[:N] if N_pad != N else out


def _reference(nodes_output, lengths, num_nodes_per_graph, wq):
    """Pure-JAX port of the PyTorch loop (lengths as python ints for slicing)."""
    outs = []
    start = 0
    for nn_, L in zip(num_nodes_per_graph, lengths):
        xb = nodes_output[:L, start:start + nn_, :]        # (L, nn, F)
        xb = jnp.transpose(xb, (1, 0, 2))                  # (nn, L, F)
        w = jnp.einsum('nlf,f->nl', xb, wq[0])             # (nn, L)
        outs.append(jnp.einsum('nl,nlf->nf', w, xb))       # (nn, F)
        start += nn_
    return jnp.concatenate(outs, axis=0)


if __name__ == "__main__":
    key = jax.random.PRNGKey(0)
    k_x1, k_w, k_x2, k_x3 = jax.random.split(key, 4)

    F = 32            # item_embed_dim
    T_max = 8
    wq = jax.random.normal(k_w, (1, F), dtype=jnp.float32) * 0.1

    # Case 1: small batch of 2 graphs (7 + 9 nodes); N divisible by the lane-fold
    # factor; auto tile -> a single full block.
    nn1, len1 = [7, 9], [5, 8]
    N1 = sum(nn1)
    x1 = jax.random.normal(k_x1, (T_max, N1, F), dtype=jnp.float32)
    o1 = jax.block_until_ready(aggregate_nodes_temporal_feature(x1, len1, nn1, wq))
    r1 = _reference(x1, len1, nn1, wq)
    assert o1.shape == (N1, F)
    assert jnp.allclose(o1, r1, rtol=1e-4, atol=1e-4), "mismatch vs reference (case 1)"

    # Case 2: N not divisible by the fold factor (pad path) + small explicit tile
    # -> multiple grid steps and a partial trailing block.
    nn2, len2 = [23, 44], [5, 8]
    N2 = sum(nn2)
    x2 = jax.random.normal(k_x2, (T_max, N2, F), dtype=jnp.float32)
    o2 = jax.block_until_ready(
        aggregate_nodes_temporal_feature(x2, len2, nn2, wq, tile_rows=8))
    r2 = _reference(x2, len2, nn2, wq)
    assert o2.shape == (N2, F)
    assert jnp.allclose(o2, r2, rtol=1e-4, atol=1e-4), "mismatch vs reference (case 2)"

    # Case 3: enough nodes to exercise the 128-row register sub-chunk loop and
    # multiple auto-sized grid steps (still ~1.3 MB of input).
    nn3, len3 = [640, 600], [6, 8]
    N3 = sum(nn3)
    x3 = jax.random.normal(k_x3, (T_max, N3, F), dtype=jnp.float32)
    o3 = jax.block_until_ready(aggregate_nodes_temporal_feature(x3, len3, nn3, wq))
    r3 = _reference(x3, len3, nn3, wq)
    assert o3.shape == (N3, F)
    assert jnp.allclose(o3, r3, rtol=1e-4, atol=1e-4), "mismatch vs reference (case 3)"

    print("KERNEL_OK")
</pallas_src>

<mosaic_0001>
module attributes {stable_mosaic.version = 11 : i64} {
  func.func @_agg_kernel(%arg0: i32, %arg1: memref<8x4x128xf32, #tpu.memory_space<vmem>>, %arg2: memref<4x128xi32, #tpu.memory_space<vmem>>, %arg3: memref<128x128xf32, #tpu.memory_space<vmem>>, %arg4: memref<4x128xf32, #tpu.memory_space<vmem>>) attributes {dimension_semantics = [#tpu.dimension_semantics<parallel>], iteration_bounds = array<i64: 1>, scalar_prefetch = 0 : i64, scratch_operands = 0 : i64, tpu.core_type = #tpu.core_type<tc>, window_params = [{transform_indices = @transform_0, window_bounds = array<i64: 8, 4, 128>}, {transform_indices = @transform_1, window_bounds = array<i64: 4, 128>}, {pipeline_mode = #tpu.pipeline_mode<synchronous>, transform_indices = @transform_2, window_bounds = array<i64: 128, 128>}, {transform_indices = @transform_3, window_bounds = array<i64: 4, 128>}]} {
    %c0 = arith.constant 0 : index
    %c0_0 = arith.constant 0 : index
    %0 = vector.load %arg3[%c0, %c0_0] : memref<128x128xf32, #tpu.memory_space<vmem>>, vector<128x128xf32>
    %c0_1 = arith.constant 0 : index
    %c0_2 = arith.constant 0 : index
    %1 = vector.load %arg2[%c0_1, %c0_2] : memref<4x128xi32, #tpu.memory_space<vmem>>, vector<4x128xi32>
    %cst = arith.constant 0.000000e+00 : f32
    %2 = vector.broadcast %cst : f32 to vector<4x128xf32>
    %c0_i32 = arith.constant 0 : i32
    %3 = arith.index_cast %c0_i32 : i32 to index
    %c0_3 = arith.constant 0 : index
    %c0_4 = arith.constant 0 : index
    %4 = vector.load %arg1[%3, %c0_3, %c0_4] : memref<8x4x128xf32, #tpu.memory_space<vmem>>, vector<1x4x128xf32>
    %5 = vector.shape_cast %4 : vector<1x4x128xf32> to vector<4x128xf32>
    %cst_5 = arith.constant dense<0.000000e+00> : vector<4x128xf32>
    %6 = tpu.matmul %5, %0, %cst_5 {dimension_numbers = #tpu.dot_dimension_numbers<[1], [0], [0], [1], [0, 0, 1, 1], [], []>} : vector<4x128xf32>, vector<128x128xf32>, vector<4x128xf32> -> vector<4x128xf32>
    %7 = vector.broadcast %c0_i32 : i32 to vector<4x128xi32>
    %8 = arith.cmpi slt, %7, %1 : vector<4x128xi32>
    %9 = arith.mulf %6, %5 : vector<4x128xf32>
    %cst_6 = arith.constant 0.000000e+00 : f32
    %10 = vector.broadcast %cst_6 : f32 to vector<4x128xf32>
    %11 = arith.select %8, %9, %10 : vector<4x128xi1>, vector<4x128xf32>
    %12 = arith.addf %2, %11 : vector<4x128xf32>
    %c1_i32 = arith.constant 1 : i32
    %13 = arith.index_cast %c1_i32 : i32 to index
    %c0_7 = arith.constant 0 : index
    %c0_8 = arith.constant 0 : index
    %14 = vector.load %arg1[%13, %c0_7, %c0_8] : memref<8x4x128xf32, #tpu.memory_space<vmem>>, vector<1x4x128xf32>
    %15 = vector.shape_cast %14 : vector<1x4x128xf32> to vector<4x128xf32>
    %cst_9 = arith.constant dense<0.000000e+00> : vector<4x128xf32>
    %16 = tpu.matmul %15, %0, %cst_9 {dimension_numbers = #tpu.dot_dimension_numbers<[1], [0], [0], [1], [0, 0, 1, 1], [], []>} : vector<4x128xf32>, vector<128x128xf32>, vector<4x128xf32> -> vector<4x128xf32>
    %17 = vector.broadcast %c1_i32 : i32 to vector<4x128xi32>
    %18 = arith.cmpi slt, %17, %1 : vector<4x128xi32>
    %19 = arith.mulf %16, %15 : vector<4x128xf32>
    %cst_10 = arith.constant 0.000000e+00 : f32
    %20 = vector.broadcast %cst_10 : f32 to vector<4x128xf32>
    %21 = arith.select %18, %19, %20 : vector<4x128xi1>, vector<4x128xf32>
    %22 = arith.addf %12, %21 : vector<4x128xf32>
    %c2_i32 = arith.constant 2 : i32
    %23 = arith.index_cast %c2_i32 : i32 to index
    %c0_11 = arith.constant 0 : index
    %c0_12 = arith.constant 0 : index
    %24 = vector.load %arg1[%23, %c0_11, %c0_12] : memref<8x4x128xf32, #tpu.memory_space<vmem>>, vector<1x4x128xf32>
    %25 = vector.shape_cast %24 : vector<1x4x128xf32> to vector<4x128xf32>
    %cst_13 = arith.constant dense<0.000000e+00> : vector<4x128xf32>
    %26 = tpu.matmul %25, %0, %cst_13 {dimension_numbers = #tpu.dot_dimension_numbers<[1], [0], [0], [1], [0, 0, 1, 1], [], []>} : vector<4x128xf32>, vector<128x128xf32>, vector<4x128xf32> -> vector<4x128xf32>
    %27 = vector.broadcast %c2_i32 : i32 to vector<4x128xi32>
    %28 = arith.cmpi slt, %27, %1 : vector<4x128xi32>
    %29 = arith.mulf %26, %25 : vector<4x128xf32>
    %cst_14 = arith.constant 0.000000e+00 : f32
    %30 = vector.broadcast %cst_14 : f32 to vector<4x128xf32>
    %31 = arith.select %28, %29, %30 : vector<4x128xi1>, vector<4x128xf32>
    %32 = arith.addf %22, %31 : vector<4x128xf32>
    %c3_i32 = arith.constant 3 : i32
    %33 = arith.index_cast %c3_i32 : i32 to index
    %c0_15 = arith.constant 0 : index
    %c0_16 = arith.constant 0 : index
    %34 = vector.load %arg1[%33, %c0_15, %c0_16] : memref<8x4x128xf32, #tpu.memory_space<vmem>>, vector<1x4x128xf32>
    %35 = vector.shape_cast %34 : vector<1x4x128xf32> to vector<4x128xf32>
    %cst_17 = arith.constant dense<0.000000e+00> : vector<4x128xf32>
    %36 = tpu.matmul %35, %0, %cst_17 {dimension_numbers = #tpu.dot_dimension_numbers<[1], [0], [0], [1], [0, 0, 1, 1], [], []>} : vector<4x128xf32>, vector<128x128xf32>, vector<4x128xf32> -> vector<4x128xf32>
    %37 = vector.broadcast %c3_i32 : i32 to vector<4x128xi32>
    %38 = arith.cmpi slt, %37, %1 : vector<4x128xi32>
    %39 = arith.mulf %36, %35 : vector<4x128xf32>
    %cst_18 = arith.constant 0.000000e+00 : f32
    %40 = vector.broadcast %cst_18 : f32 to vector<4x128xf32>
    %41 = arith.select %38, %39, %40 : vector<4x128xi1>, vector<4x128xf32>
    %42 = arith.addf %32, %41 : vector<4x128xf32>
    %c4_i32 = arith.constant 4 : i32
    %43 = arith.index_cast %c4_i32 : i32 to index
    %c0_19 = arith.constant 0 : index
    %c0_20 = arith.constant 0 : index
    %44 = vector.load %arg1[%43, %c0_19, %c0_20] : memref<8x4x128xf32, #tpu.memory_space<vmem>>, vector<1x4x128xf32>
    %45 = vector.shape_cast %44 : vector<1x4x128xf32> to vector<4x128xf32>
    %cst_21 = arith.constant dense<0.000000e+00> : vector<4x128xf32>
    %46 = tpu.matmul %45, %0, %cst_21 {dimension_numbers = #tpu.dot_dimension_numbers<[1], [0], [0], [1], [0, 0, 1, 1], [], []>} : vector<4x128xf32>, vector<128x128xf32>, vector<4x128xf32> -> vector<4x128xf32>
    %47 = vector.broadcast %c4_i32 : i32 to vector<4x128xi32>
    %48 = arith.cmpi slt, %47, %1 : vector<4x128xi32>
    %49 = arith.mulf %46, %45 : vector<4x128xf32>
    %cst_22 = arith.constant 0.000000e+00 : f32
    %50 = vector.broadcast %cst_22 : f32 to vector<4x128xf32>
    %51 = arith.select %48, %49, %50 : vector<4x128xi1>, vector<4x128xf32>
    %52 = arith.addf %42, %51 : vector<4x128xf32>
    %c5_i32 = arith.constant 5 : i32
    %53 = arith.index_cast %c5_i32 : i32 to index
    %c0_23 = arith.constant 0 : index
    %c0_24 = arith.constant 0 : index
    %54 = vector.load %arg1[%53, %c0_23, %c0_24] : memref<8x4x128xf32, #tpu.memory_space<vmem>>, vector<1x4x128xf32>
    %55 = vector.shape_cast %54 : vector<1x4x128xf32> to vector<4x128xf32>
    %cst_25 = arith.constant dense<0.000000e+00> : vector<4x128xf32>
    %56 = tpu.matmul %55, %0, %cst_25 {dimension_numbers = #tpu.dot_dimension_numbers<[1], [0], [0], [1], [0, 0, 1, 1], [], []>} : vector<4x128xf32>, vector<128x128xf32>, vector<4x128xf32> -> vector<4x128xf32>
    %57 = vector.broadcast %c5_i32 : i32 to vector<4x128xi32>
    %58 = arith.cmpi slt, %57, %1 : vector<4x128xi32>
    %59 = arith.mulf %56, %55 : vector<4x128xf32>
    %cst_26 = arith.constant 0.000000e+00 : f32
    %60 = vector.broadcast %cst_26 : f32 to vector<4x128xf32>
    %61 = arith.select %58, %59, %60 : vector<4x128xi1>, vector<4x128xf32>
    %62 = arith.addf %52, %61 : vector<4x128xf32>
    %c6_i32 = arith.constant 6 : i32
    %63 = arith.index_cast %c6_i32 : i32 to index
    %c0_27 = arith.constant 0 : index
    %c0_28 = arith.constant 0 : index
    %64 = vector.load %arg1[%63, %c0_27, %c0_28] : memref<8x4x128xf32, #tpu.memory_space<vmem>>, vector<1x4x128xf32>
    %65 = vector.shape_cast %64 : vector<1x4x128xf32> to vector<4x128xf32>
    %cst_29 = arith.constant dense<0.000000e+00> : vector<4x128xf32>
    %66 = tpu.matmul %65, %0, %cst_29 {dimension_numbers = #tpu.dot_dimension_numbers<[1], [0], [0], [1], [0, 0, 1, 1], [], []>} : vector<4x128xf32>, vector<128x128xf32>, vector<4x128xf32> -> vector<4x128xf32>
    %67 = vector.broadcast %c6_i32 : i32 to vector<4x128xi32>
    %68 = arith.cmpi slt, %67, %1 : vector<4x128xi32>
    %69 = arith.mulf %66, %65 : vector<4x128xf32>
    %cst_30 = arith.constant 0.000000e+00 : f32
    %70 = vector.broadcast %cst_30 : f32 to vector<4x128xf32>
    %71 = arith.select %68, %69, %70 : vector<4x128xi1>, vector<4x128xf32>
    %72 = arith.addf %62, %71 : vector<4x128xf32>
    %c7_i32 = arith.constant 7 : i32
    %73 = arith.index_cast %c7_i32 : i32 to index
    %c0_31 = arith.constant 0 : index
    %c0_32 = arith.constant 0 : index
    %74 = vector.load %arg1[%73, %c0_31, %c0_32] : memref<8x4x128xf32, #tpu.memory_space<vmem>>, vector<1x4x128xf32>
    %75 = vector.shape_cast %74 : vector<1x4x128xf32> to vector<4x128xf32>
    %cst_33 = arith.constant dense<0.000000e+00> : vector<4x128xf32>
    %76 = tpu.matmul %75, %0, %cst_33 {dimension_numbers = #tpu.dot_dimension_numbers<[1], [0], [0], [1], [0, 0, 1, 1], [], []>} : vector<4x128xf32>, vector<128x128xf32>, vector<4x128xf32> -> vector<4x128xf32>
    %77 = vector.broadcast %c7_i32 : i32 to vector<4x128xi32>
    %78 = arith.cmpi slt, %77, %1 : vector<4x128xi32>
    %79 = arith.mulf %76, %75 : vector<4x128xf32>
    %cst_34 = arith.constant 0.000000e+00 : f32
    %80 = vector.broadcast %cst_34 : f32 to vector<4x128xf32>
    %81 = arith.select %78, %79, %80 : vector<4x128xi1>, vector<4x128xf32>
    %82 = arith.addf %72, %81 : vector<4x128xf32>
    %c8_i32 = arith.constant 8 : i32
    %c0_35 = arith.constant 0 : index
    %c0_36 = arith.constant 0 : index
    %83 = vector.load %arg4[%c0_35, %c0_36] : memref<4x128xf32, #tpu.memory_space<vmem>>, vector<4x128xf32>
    tpu.vector_store %arg4[%c0_35, %c0_36], %82 {strides = array<i32>} : memref<4x128xf32, #tpu.memory_space<vmem>>, vector<4x128xf32>,
    return
  }
  func.func @transform_0(%arg0: i32) -> (i32, i32, i32) {
    %c0_i32 = arith.constant 0 : i32
    %c0_i32_0 = arith.constant 0 : i32
    %c0_i32_1 = arith.constant 0 : i32
    return %c0_i32, %arg0, %c0_i32_0 : i32, i32, i32
  }
  func.func @transform_1(%arg0: i32) -> (i32, i32) {
    %c0_i32 = arith.constant 0 : i32
    %c0_i32_0 = arith.constant 0 : i32
    return %arg0, %c0_i32 : i32, i32
  }
  func.func @transform_2(%arg0: i32) -> (i32, i32) {
    %c0_i32 = arith.constant 0 : i32
    %c0_i32_0 = arith.constant 0 : i32
    %c0_i32_1 = arith.constant 0 : i32
    return %c0_i32, %c0_i32_0 : i32, i32
  }
  func.func @transform_3(%arg0: i32) -> (i32, i32) {
    %c0_i32 = arith.constant 0 : i32
    %c0_i32_0 = arith.constant 0 : i32
    return %arg0, %c0_i32 : i32, i32
  }
}

</mosaic_0001>

<llo_original>
// kernel: tpu_custom_call.1
$region0: #{tpu_custom_call.1}
  #allocation0 [shape = 'u32[]', space=smem, size = 0x4, offset = 0x4, fixed_abs, tag = 'smem constant byte address 0x4 - core index']
  #allocation1 [shape = 'u32[144,128]{1,0:T(1,128)}', space=vmem, size = 0x12000, scoped, tag = 'internal scratch']
  %s0 = inlined_call_operand.hbm [shape: f32[8,4,128], index: 0, kind: input, shape index: {}]
  %s1 = inlined_call_operand.hbm [shape: s32[4,128], index: 1, kind: input, shape index: {}]
  %s2 = inlined_call_operand.hbm [shape: f32[128,128], index: 2, kind: input, shape index: {}]
  %s3 = inlined_call_operand.hbm [shape: f32[4,128], index: 3, kind: output, shape index: {}]
  %s4 = sld [smem:[#allocation0]]
  $region34: #{tpu_custom_call.1} parent=0
    _
  %s6 = ssub.s32 1, %s4
  %s7 = scalar_select 0, %s6, %s4
  $region1: #{tpu_custom_call.1} parent=0
    #allocation2 [shape = 'u8[16384]{0}', space=vmem, size = 0x4000, scoped, tag = 'input window, operand 0, single buffered']
    #allocation3 [shape = 's32[1]{0}', space=sflag, size = 0x4, scoped, tag = 'scoped memory for tpu_custom_call.1']
    #allocation4 [shape = 's32[1]{0}', space=sflag, size = 0x4, scoped, tag = 'scoped memory for tpu_custom_call.1']
    #allocation5 [shape = 'u8[2048]{0}', space=vmem, size = 0x800, scoped, tag = 'input window, operand 1, single buffered']
    #allocation6 [shape = 's32[1]{0}', space=sflag, size = 0x4, scoped, tag = 'scoped memory for tpu_custom_call.1']
    #allocation7 [shape = 'u8[65536]{0}', space=vmem, size = 0x10000, scoped, tag = 'input window, operand 2, single buffered']
    #allocation8 [shape = 'u8[2048]{0}', space=vmem, size = 0x800, scoped, tag = 'output window, operand 0, single buffered']
    %8 = vsyncpa [#allocation3], 0
    %9 = vsyncpa [#allocation6], 0
    %10 = vsyncpa [#allocation4], 0
    // Predicated region
    $region2: #{tpu_custom_call.1} parent=1 // pred_check
      _
    $region3: #{tpu_custom_call.1} parent=1 // pred_check_branch
      %12 = sbr.rel (0) target = $region5
    $region4: #{tpu_custom_call.1} parent=1 // pred_region
      %s14 = ssub.s32 512, 512
      %15 = vsyncadd [#allocation3], %s14
      %s16 = sshll.u32 [#allocation2], 4
      %s17 = int_to_ptr.vmem [resolvable:$true] %s16
      %22 = dma.hbm_to_vmem [thread:$0]  %s0, 512, %s17, [#allocation3], 64, 64, 4
    $region5: #{tpu_custom_call.1} parent=1 // pred_fallthru
      _
    // Predicated region
    $region6: #{tpu_custom_call.1} parent=1 // pred_check
      _
    $region7: #{tpu_custom_call.1} parent=1 // pred_check_branch
      %24 = sbr.rel (0) target = $region9
    $region8: #{tpu_custom_call.1} parent=1 // pred_region
      %s26 = ssub.s32 64, 64
      %27 = vsyncadd [#allocation6], %s26
      %s29 = sshll.u32 [#allocation5], 4
      %s30 = int_to_ptr.vmem [resolvable:$true] %s29
      %32 = dma.hbm_to_vmem [thread:$0]  %s1, 64, %s30, [#allocation6]
    $region9: #{tpu_custom_call.1} parent=1 // pred_fallthru
      _
    // Predicated region
    $region10: #{tpu_custom_call.1} parent=1 // pred_check
      _
    $region11: #{tpu_custom_call.1} parent=1 // pred_check_branch
      %34 = sbr.rel (0) target = $region13
    $region12: #{tpu_custom_call.1} parent=1 // pred_region
      %s36 = ssub.s32 2048, 2048
      %37 = vsyncadd [#allocation6], %s36
      %s38 = sshll.u32 [#allocation7], 4
      %s39 = int_to_ptr.vmem [resolvable:$true] %s38
      %44 = dma.hbm_to_vmem [thread:$0]  %s2, 2048, %s39, [#allocation6], 128, 128, 8
    $region13: #{tpu_custom_call.1} parent=1 // pred_fallthru
      _
    // Predicated region
    $region14: #{tpu_custom_call.1} parent=1 // pred_check
      _
    $region15: #{tpu_custom_call.1} parent=1 // pred_check_branch
      %46 = sbr.rel (0) target = $region17
    $region16: #{tpu_custom_call.1} parent=1 // pred_region
      %47 = dma.done [#allocation3], 512
    $region17: #{tpu_custom_call.1} parent=1 // pred_fallthru
      _
    // Predicated region
    $region18: #{tpu_custom_call.1} parent=1 // pred_check
      _
    $region19: #{tpu_custom_call.1} parent=1 // pred_check_branch
      %49 = sbr.rel (0) target = $region21
    $region20: #{tpu_custom_call.1} parent=1 // pred_region
      %50 = dma.done [#allocation6], 64
    $region21: #{tpu_custom_call.1} parent=1 // pred_fallthru
      _
    // Predicated region
    $region22: #{tpu_custom_call.1} parent=1 // pred_check
      _
    $region23: #{tpu_custom_call.1} parent=1 // pred_check_branch
      %52 = sbr.rel (0) target = $region25
    $region24: #{tpu_custom_call.1} parent=1 // pred_region
      %53 = dma.done [#allocation6], 2048
    $region25: #{tpu_custom_call.1} parent=1 // pred_fallthru
      _
    %v54 = vld [vmem:[#allocation7] sm:$0xff]
    %v55 = vld [vmem:[#allocation7 + $0x8] sm:$0xff]
    %v56 = vld [vmem:[#allocation7 + $0x10] sm:$0xff]
    %v57 = vld [vmem:[#allocation7 + $0x18] sm:$0xff]
    %v58 = vld [vmem:[#allocation7 + $0x20] sm:$0xff]
    %v59 = vld [vmem:[#allocation7 + $0x28] sm:$0xff]
    %v60 = vld [vmem:[#allocation7 + $0x30] sm:$0xff]
    %v61 = vld [vmem:[#allocation7 + $0x38] sm:$0xff]
    %v62 = vld [vmem:[#allocation7 + $0x40] sm:$0xff]
    %v63 = vld [vmem:[#allocation7 + $0x48] sm:$0xff]
    %v64 = vld [vmem:[#allocation7 + $0x50] sm:$0xff]
    %v65 = vld [vmem:[#allocation7 + $0x58] sm:$0xff]
    %v66 = vld [vmem:[#allocation7 + $0x60] sm:$0xff]
    %v67 = vld [vmem:[#allocation7 + $0x68] sm:$0xff]
    %v68 = vld [vmem:[#allocation7 + $0x70] sm:$0xff]
    %v69 = vld [vmem:[#allocation7 + $0x78] sm:$0xff]
    %v70 = vld [vmem:[#allocation5] sm:$0xf]
    %v71 = vld [vmem:[#allocation2] sm:$0xf]
    %72 = vmatprep.subr.mxu0 0.0
    %73 = vmatpush1.msra.mxu0 %v69
    %74 = vmatprep.subr.mxu0 0.0
    %75 = vmatpush1.msra.mxu0 %v68
    %76 = vmatprep.subr.mxu0 0.0
    %77 = vmatpush1.msra.mxu0 %v67
    %78 = vmatprep.subr.mxu0 0.0
    %79 = vmatpush1.msra.mxu0 %v66
    %80 = vmatprep.subr.mxu0 0.0
    %81 = vmatpush1.msra.mxu0 %v65
    %82 = vmatprep.subr.mxu0 0.0
    %83 = vmatpush1.msra.mxu0 %v64
    %84 = vmatprep.subr.mxu0 0.0
    %85 = vmatpush1.msra.mxu0 %v63
    %86 = vmatprep.subr.mxu0 0.0
    %87 = vmatpush1.msra.mxu0 %v62
    %88 = vmatprep.subr.mxu0 0.0
    %89 = vmatpush1.msra.mxu0 %v61
    %90 = vmatprep.subr.mxu0 0.0
    %91 = vmatpush1.msra.mxu0 %v60
    %92 = vmatprep.subr.mxu0 0.0
    %93 = vmatpush1.msra.mxu0 %v59
    %94 = vmatprep.subr.mxu0 0.0
    %95 = vmatpush1.msra.mxu0 %v58
    %96 = vmatprep.subr.mxu0 0.0
    %97 = vmatpush1.msra.mxu0 %v57
    %98 = vmatprep.subr.mxu0 0.0
    %99 = vmatpush1.msra.mxu0 %v56
    %100 = vmatprep.subr.mxu0 0.0
    %101 = vmatpush1.msra.mxu0 %v55
    %102 = vmatprep.subr.mxu0 0.0
    %103 = vmatpush1.msra.mxu0 %v54
    %104 = vmatprep.subr.mxu0 0.0
    %105 = vmatpush2.msra.mxu0 0.0
    %106 = vmatprep.subr.mxu0 0.0
    %107 = vmatpush2.msra.mxu0 0.0
    %108 = vmatprep.subr.mxu0 0.0
    %109 = vmatpush2.msra.mxu0 0.0
    %110 = vmatprep.subr.mxu0 0.0
    %111 = vmatpush2.msra.mxu0 0.0
    %112 = vmatprep.subr.mxu0 0.0
    %113 = vmatpush2.msra.mxu0 0.0
    %114 = vmatprep.subr.mxu0 0.0
    %115 = vmatpush2.msra.mxu0 0.0
    %116 = vmatprep.subr.mxu0 0.0
    %117 = vmatpush2.msra.mxu0 0.0
    %118 = vmatprep.subr.mxu0 0.0
    %119 = vmatpush2.msra.mxu0 0.0
    %120 = vmatprep.subr.mxu0 0.0
    %121 = vmatpush2.msra.mxu0 0.0
    %122 = vmatprep.subr.mxu0 0.0
    %123 = vmatpush2.msra.mxu0 0.0
    %124 = vmatprep.subr.mxu0 0.0
    %125 = vmatpush2.msra.mxu0 0.0
    %126 = vmatprep.subr.mxu0 0.0
    %127 = vmatpush2.msra.mxu0 0.0
    %128 = vmatprep.subr.mxu0 0.0
    %129 = vmatpush2.msra.mxu0 0.0
    %130 = vmatprep.subr.mxu0 0.0
    %131 = vmatpush2.msra.mxu0 0.0
    %132 = vmatprep.subr.mxu0 0.0
    %133 = vmatpush2.msra.mxu0 0.0
    %134 = vmatprep.subr.mxu0 0.0
    %135 = vmatpush2.msra.mxu0 0.0
    %136 = vmatprep.mubr.f32.mxu0 0.0
    %137 = vmatmul.mubr.f32.gmra.mxu0 %v71
    %v138 = vpop.f32.mrf.mxu0
    %v139 = vadd.f32 0.0, %v138
    %v140 = vpop.f32.mrf.mxu0
    %141 = vdwg.mxu0
    %vm142 = vcmp.gt.s32.totalorder %v70, 0
    %v143 = vmul.f32 %v139, %v71
    %v144 = vsel %vm142, %v143, 0.0
    %v145 = vadd.f32 %v144, 0.0
    %s146 = scalar_lea.vmem [#allocation2], 4
    %v147 = vld [vmem:[%s146] sm:$0xf]
    %148 = vmatprep.subr.mxu0 0.0
    %149 = vmatpush1.msra.mxu0 %v69
    %150 = vmatprep.subr.mxu0 0.0
    %151 = vmatpush1.msra.mxu0 %v68
    %152 = vmatprep.subr.mxu0 0.0
    %153 = vmatpush1.msra.mxu0 %v67
    %154 = vmatprep.subr.mxu0 0.0
    %155 = vmatpush1.msra.mxu0 %v66
    %156 = vmatprep.subr.mxu0 0.0
    %157 = vmatpush1.msra.mxu0 %v65
    %158 = vmatprep.subr.mxu0 0.0
    %159 = vmatpush1.msra.mxu0 %v64
    %160 = vmatprep.subr.mxu0 0.0
    %161 = vmatpush1.msra.mxu0 %v63
    %162 = vmatprep.subr.mxu0 0.0
    %163 = vmatpush1.msra.mxu0 %v62
    %164 = vmatprep.subr.mxu0 0.0
    %165 = vmatpush1.msra.mxu0 %v61
    %166 = vmatprep.subr.mxu0 0.0
    %167 = vmatpush1.msra.mxu0 %v60
    %168 = vmatprep.subr.mxu0 0.0
    %169 = vmatpush1.msra.mxu0 %v59
    %170 = vmatprep.subr.mxu0 0.0
    %171 = vmatpush1.msra.mxu0 %v58
    %172 = vmatprep.subr.mxu0 0.0
    %173 = vmatpush1.msra.mxu0 %v57
    %174 = vmatprep.subr.mxu0 0.0
    %175 = vmatpush1.msra.mxu0 %v56
    %176 = vmatprep.subr.mxu0 0.0
    %177 = vmatpush1.msra.mxu0 %v55
    %178 = vmatprep.subr.mxu0 0.0
    %179 = vmatpush1.msra.mxu0 %v54
    %180 = vmatprep.subr.mxu0 0.0
    %181 = vmatpush2.msra.mxu0 0.0
    %182 = vmatprep.subr.mxu0 0.0
    %183 = vmatpush2.msra.mxu0 0.0
    %184 = vmatprep.subr.mxu0 0.0
    %185 = vmatpush2.msra.mxu0 0.0
    %186 = vmatprep.subr.mxu0 0.0
    %187 = vmatpush2.msra.mxu0 0.0
    %188 = vmatprep.subr.mxu0 0.0
    %189 = vmatpush2.msra.mxu0 0.0
    %190 = vmatprep.subr.mxu0 0.0
    %191 = vmatpush2.msra.mxu0 0.0
    %192 = vmatprep.subr.mxu0 0.0
    %193 = vmatpush2.msra.mxu0 0.0
    %194 = vmatprep.subr.mxu0 0.0
    %195 = vmatpush2.msra.mxu0 0.0
    %196 = vmatprep.subr.mxu0 0.0
    %197 = vmatpush2.msra.mxu0 0.0
    %198 = vmatprep.subr.mxu0 0.0
    %199 = vmatpush2.msra.mxu0 0.0
    %200 = vmatprep.subr.mxu0 0.0
    %201 = vmatpush2.msra.mxu0 0.0
    %202 = vmatprep.subr.mxu0 0.0
    %203 = vmatpush2.msra.mxu0 0.0
    %204 = vmatprep.subr.mxu0 0.0
    %205 = vmatpush2.msra.mxu0 0.0
    %206 = vmatprep.subr.mxu0 0.0
    %207 = vmatpush2.msra.mxu0 0.0
    %208 = vmatprep.subr.mxu0 0.0
    %209 = vmatpush2.msra.mxu0 0.0
    %210 = vmatprep.subr.mxu0 0.0
    %211 = vmatpush2.msra.mxu0 0.0
    %212 = vmatprep.mubr.f32.mxu0 0.0
    %213 = vmatmul.mubr.f32.gmra.mxu0 %v147
    %v214 = vpop.f32.mrf.mxu0
    %v215 = vadd.f32 0.0, %v214
    %v216 = vpop.f32.mrf.mxu0
    %217 = vdwg.mxu0
    %vm218 = vcmp.gt.s32.totalorder %v70, 1
    %v219 = vmul.f32 %v215, %v147
    %v220 = vsel %vm218, %v219, 0.0
    %v221 = vadd.f32 %v145, %v220
    %s222 = scalar_lea.vmem [#allocation2], 8
    %v223 = vld [vmem:[%s222] sm:$0xf]
    %224 = vmatprep.subr.mxu0 0.0
    %225 = vmatpush1.msra.mxu0 %v69
    %226 = vmatprep.subr.mxu0 0.0
    %227 = vmatpush1.msra.mxu0 %v68
    %228 = vmatprep.subr.mxu0 0.0
    %229 = vmatpush1.msra.mxu0 %v67
    %230 = vmatprep.subr.mxu0 0.0
    %231 = vmatpush1.msra.mxu0 %v66
    %232 = vmatprep.subr.mxu0 0.0
    %233 = vmatpush1.msra.mxu0 %v65
    %234 = vmatprep.subr.mxu0 0.0
    %235 = vmatpush1.msra.mxu0 %v64
    %236 = vmatprep.subr.mxu0 0.0
    %237 = vmatpush1.msra.mxu0 %v63
    %238 = vmatprep.subr.mxu0 0.0
    %239 = vmatpush1.msra.mxu0 %v62
    %240 = vmatprep.subr.mxu0 0.0
    %241 = vmatpush1.msra.mxu0 %v61
    %242 = vmatprep.subr.mxu0 0.0
    %243 = vmatpush1.msra.mxu0 %v60
    %244 = vmatprep.subr.mxu0 0.0
    %245 = vmatpush1.msra.mxu0 %v59
    %246 = vmatprep.subr.mxu0 0.0
    %247 = vmatpush1.msra.mxu0 %v58
    %248 = vmatprep.subr.mxu0 0.0
    %249 = vmatpush1.msra.mxu0 %v57
    %250 = vmatprep.subr.mxu0 0.0
    %251 = vmatpush1.msra.mxu0 %v56
    %252 = vmatprep.subr.mxu0 0.0
    %253 = vmatpush1.msra.mxu0 %v55
    %254 = vmatprep.subr.mxu0 0.0
    %255 = vmatpush1.msra.mxu0 %v54
    %256 = vmatprep.subr.mxu0 0.0
    %257 = vmatpush2.msra.mxu0 0.0
    %258 = vmatprep.subr.mxu0 0.0
    %259 = vmatpush2.msra.mxu0 0.0
    %260 = vmatprep.subr.mxu0 0.0
    %261 = vmatpush2.msra.mxu0 0.0
    %262 = vmatprep.subr.mxu0 0.0
    %263 = vmatpush2.msra.mxu0 0.0
    %264 = vmatprep.subr.mxu0 0.0
    %265 = vmatpush2.msra.mxu0 0.0
    %266 = vmatprep.subr.mxu0 0.0
    %267 = vmatpush2.msra.mxu0 0.0
    %268 = vmatprep.subr.mxu0 0.0
    %269 = vmatpush2.msra.mxu0 0.0
    %270 = vmatprep.subr.mxu0 0.0
    %271 = vmatpush2.msra.mxu0 0.0
    %272 = vmatprep.subr.mxu0 0.0
    %273 = vmatpush2.msra.mxu0 0.0
    %274 = vmatprep.subr.mxu0 0.0
    %275 = vmatpush2.msra.mxu0 0.0
    %276 = vmatprep.subr.mxu0 0.0
    %277 = vmatpush2.msra.mxu0 0.0
    %278 = vmatprep.subr.mxu0 0.0
    %279 = vmatpush2.msra.mxu0 0.0
    %280 = vmatprep.subr.mxu0 0.0
    %281 = vmatpush2.msra.mxu0 0.0
    %282 = vmatprep.subr.mxu0 0.0
    %283 = vmatpush2.msra.mxu0 0.0
    %284 = vmatprep.subr.mxu0 0.0
    %285 = vmatpush2.msra.mxu0 0.0
    %286 = vmatprep.subr.mxu0 0.0
    %287 = vmatpush2.msra.mxu0 0.0
    %288 = vmatprep.mubr.f32.mxu0 0.0
    %289 = vmatmul.mubr.f32.gmra.mxu0 %v223
    %v290 = vpop.f32.mrf.mxu0
    %v291 = vadd.f32 0.0, %v290
    %v292 = vpop.f32.mrf.mxu0
    %293 = vdwg.mxu0
    %vm294 = vcmp.gt.s32.totalorder %v70, 2
    %v295 = vmul.f32 %v291, %v223
    %v296 = vsel %vm294, %v295, 0.0
    %v297 = vadd.f32 %v221, %v296
    %s298 = scalar_lea.vmem [#allocation2], 12
    %v299 = vld [vmem:[%s298] sm:$0xf]
    %300 = vmatprep.subr.mxu0 0.0
    %301 = vmatpush1.msra.mxu0 %v69
    %302 = vmatprep.subr.mxu0 0.0
    %303 = vmatpush1.msra.mxu0 %v68
    %304 = vmatprep.subr.mxu0 0.0
    %305 = vmatpush1.msra.mxu0 %v67
    %306 = vmatprep.subr.mxu0 0.0
    %307 = vmatpush1.msra.mxu0 %v66
    %308 = vmatprep.subr.mxu0 0.0
    %309 = vmatpush1.msra.mxu0 %v65
    %310 = vmatprep.subr.mxu0 0.0
    %311 = vmatpush1.msra.mxu0 %v64
    %312 = vmatprep.subr.mxu0 0.0
    %313 = vmatpush1.msra.mxu0 %v63
    %314 = vmatprep.subr.mxu0 0.0
    %315 = vmatpush1.msra.mxu0 %v62
    %316 = vmatprep.subr.mxu0 0.0
    %317 = vmatpush1.msra.mxu0 %v61
    %318 = vmatprep.subr.mxu0 0.0
    %319 = vmatpush1.msra.mxu0 %v60
    %320 = vmatprep.subr.mxu0 0.0
    %321 = vmatpush1.msra.mxu0 %v59
    %322 = vmatprep.subr.mxu0 0.0
    %323 = vmatpush1.msra.mxu0 %v58
    %324 = vmatprep.subr.mxu0 0.0
    %325 = vmatpush1.msra.mxu0 %v57
    %326 = vmatprep.subr.mxu0 0.0
    %327 = vmatpush1.msra.mxu0 %v56
    %328 = vmatprep.subr.mxu0 0.0
    %329 = vmatpush1.msra.mxu0 %v55
    %330 = vmatprep.subr.mxu0 0.0
    %331 = vmatpush1.msra.mxu0 %v54
    %332 = vmatprep.subr.mxu0 0.0
    %333 = vmatpush2.msra.mxu0 0.0
    %334 = vmatprep.subr.mxu0 0.0
    %335 = vmatpush2.msra.mxu0 0.0
    %336 = vmatprep.subr.mxu0 0.0
    %337 = vmatpush2.msra.mxu0 0.0
    %338 = vmatprep.subr.mxu0 0.0
    %339 = vmatpush2.msra.mxu0 0.0
    %340 = vmatprep.subr.mxu0 0.0
    %341 = vmatpush2.msra.mxu0 0.0
    %342 = vmatprep.subr.mxu0 0.0
    %343 = vmatpush2.msra.mxu0 0.0
    %344 = vmatprep.subr.mxu0 0.0
    %345 = vmatpush2.msra.mxu0 0.0
    %346 = vmatprep.subr.mxu0 0.0
    %347 = vmatpush2.msra.mxu0 0.0
    %348 = vmatprep.subr.mxu0 0.0
    %349 = vmatpush2.msra.mxu0 0.0
    %350 = vmatprep.subr.mxu0 0.0
    %351 = vmatpush2.msra.mxu0 0.0
    %352 = vmatprep.subr.mxu0 0.0
    %353 = vmatpush2.msra.mxu0 0.0
    %354 = vmatprep.subr.mxu0 0.0
    %355 = vmatpush2.msra.mxu0 0.0
    %356 = vmatprep.subr.mxu0 0.0
    %357 = vmatpush2.msra.mxu0 0.0
    %358 = vmatprep.subr.mxu0 0.0
    %359 = vmatpush2.msra.mxu0 0.0
    %360 = vmatprep.subr.mxu0 0.0
    %361 = vmatpush2.msra.mxu0 0.0
    %362 = vmatprep.subr.mxu0 0.0
    %363 = vmatpush2.msra.mxu0 0.0
    %364 = vmatprep.mubr.f32.mxu0 0.0
    %365 = vmatmul.mubr.f32.gmra.mxu0 %v299
    %v366 = vpop.f32.mrf.mxu0
    %v367 = vadd.f32 0.0, %v366
    %v368 = vpop.f32.mrf.mxu0
    %369 = vdwg.mxu0
    %vm370 = vcmp.gt.s32.totalorder %v70, 3
    %v371 = vmul.f32 %v367, %v299
    %v372 = vsel %vm370, %v371, 0.0
    %v373 = vadd.f32 %v297, %v372
    %s374 = scalar_lea.vmem [#allocation2], 16
    %v375 = vld [vmem:[%s374] sm:$0xf]
    %376 = vmatprep.subr.mxu0 0.0
    %377 = vmatpush1.msra.mxu0 %v69
    %378 = vmatprep.subr.mxu0 0.0
    %379 = vmatpush1.msra.mxu0 %v68
    %380 = vmatprep.subr.mxu0 0.0
    %381 = vmatpush1.msra.mxu0 %v67
    %382 = vmatprep.subr.mxu0 0.0
    %383 = vmatpush1.msra.mxu0 %v66
    %384 = vmatprep.subr.mxu0 0.0
    %385 = vmatpush1.msra.mxu0 %v65
    %386 = vmatprep.subr.mxu0 0.0
    %387 = vmatpush1.msra.mxu0 %v64
    %388 = vmatprep.subr.mxu0 0.0
    %389 = vmatpush1.msra.mxu0 %v63
    %390 = vmatprep.subr.mxu0 0.0
    %391 = vmatpush1.msra.mxu0 %v62
    %392 = vmatprep.subr.mxu0 0.0
    %393 = vmatpush1.msra.mxu0 %v61
    %394 = vmatprep.subr.mxu0 0.0
    %395 = vmatpush1.msra.mxu0 %v60
    %396 = vmatprep.subr.mxu0 0.0
    %397 = vmatpush1.msra.mxu0 %v59
    %398 = vmatprep.subr.mxu0 0.0
    %399 = vmatpush1.msra.mxu0 %v58
    %400 = vmatprep.subr.mxu0 0.0
    %401 = vmatpush1.msra.mxu0 %v57
    %402 = vmatprep.subr.mxu0 0.0
    %403 = vmatpush1.msra.mxu0 %v56
    %404 = vmatprep.subr.mxu0 0.0
    %405 = vmatpush1.msra.mxu0 %v55
    %406 = vmatprep.subr.mxu0 0.0
    %407 = vmatpush1.msra.mxu0 %v54
    %408 = vmatprep.subr.mxu0 0.0
    %409 = vmatpush2.msra.mxu0 0.0
    %410 = vmatprep.subr.mxu0 0.0
    %411 = vmatpush2.msra.mxu0 0.0
    %412 = vmatprep.subr.mxu0 0.0
    %413 = vmatpush2.msra.mxu0 0.0
    %414 = vmatprep.subr.mxu0 0.0
    %415 = vmatpush2.msra.mxu0 0.0
    %416 = vmatprep.subr.mxu0 0.0
    %417 = vmatpush2.msra.mxu0 0.0
    %418 = vmatprep.subr.mxu0 0.0
    %419 = vmatpush2.msra.mxu0 0.0
    %420 = vmatprep.subr.mxu0 0.0
    %421 = vmatpush2.msra.mxu0 0.0
    %422 = vmatprep.subr.mxu0 0.0
    %423 = vmatpush2.msra.mxu0 0.0
    %424 = vmatprep.subr.mxu0 0.0
    %425 = vmatpush2.msra.mxu0 0.0
    %426 = vmatprep.subr.mxu0 0.0
    %427 = vmatpush2.msra.mxu0 0.0
    %428 = vmatprep.subr.mxu0 0.0
    %429 = vmatpush2.msra.mxu0 0.0
    %430 = vmatprep.subr.mxu0 0.0
    %431 = vmatpush2.msra.mxu0 0.0
    %432 = vmatprep.subr.mxu0 0.0
    %433 = vmatpush2.msra.mxu0 0.0
    %434 = vmatprep.subr.mxu0 0.0
    %435 = vmatpush2.msra.mxu0 0.0
    %436 = vmatprep.subr.mxu0 0.0
    %437 = vmatpush2.msra.mxu0 0.0
    %438 = vmatprep.subr.mxu0 0.0
    %439 = vmatpush2.msra.mxu0 0.0
    %440 = vmatprep.mubr.f32.mxu0 0.0
    %441 = vmatmul.mubr.f32.gmra.mxu0 %v375
    %v442 = vpop.f32.mrf.mxu0
    %v443 = vadd.f32 0.0, %v442
    %v444 = vpop.f32.mrf.mxu0
    %445 = vdwg.mxu0
    %vm446 = vcmp.gt.s32.totalorder %v70, 4
    %v447 = vmul.f32 %v443, %v375
    %v448 = vsel %vm446, %v447, 0.0
    %v449 = vadd.f32 %v373, %v448
    %s450 = scalar_lea.vmem [#allocation2], 20
    %v451 = vld [vmem:[%s450] sm:$0xf]
    %452 = vmatprep.subr.mxu0 0.0
    %453 = vmatpush1.msra.mxu0 %v69
    %454 = vmatprep.subr.mxu0 0.0
    %455 = vmatpush1.msra.mxu0 %v68
    %456 = vmatprep.subr.mxu0 0.0
    %457 = vmatpush1.msra.mxu0 %v67
    %458 = vmatprep.subr.mxu0 0.0
    %459 = vmatpush1.msra.mxu0 %v66
    %460 = vmatprep.subr.mxu0 0.0
    %461 = vmatpush1.msra.mxu0 %v65
    %462 = vmatprep.subr.mxu0 0.0
    %463 = vmatpush1.msra.mxu0 %v64
    %464 = vmatprep.subr.mxu0 0.0
    %465 = vmatpush1.msra.mxu0 %v63
    %466 = vmatprep.subr.mxu0 0.0
    %467 = vmatpush1.msra.mxu0 %v62
    %468 = vmatprep.subr.mxu0 0.0
    %469 = vmatpush1.msra.mxu0 %v61
    %470 = vmatprep.subr.mxu0 0.0
    %471 = vmatpush1.msra.mxu0 %v60
    %472 = vmatprep.subr.mxu0 0.0
    %473 = vmatpush1.msra.mxu0 %v59
    %474 = vmatprep.subr.mxu0 0.0
    %475 = vmatpush1.msra.mxu0 %v58
    %476 = vmatprep.subr.mxu0 0.0
    %477 = vmatpush1.msra.mxu0 %v57
    %478 = vmatprep.subr.mxu0 0.0
    %479 = vmatpush1.msra.mxu0 %v56
    %480 = vmatprep.subr.mxu0 0.0
    %481 = vmatpush1.msra.mxu0 %v55
    %482 = vmatprep.subr.mxu0 0.0
    %483 = vmatpush1.msra.mxu0 %v54
    %484 = vmatprep.subr.mxu0 0.0
    %485 = vmatpush2.msra.mxu0 0.0
    %486 = vmatprep.subr.mxu0 0.0
    %487 = vmatpush2.msra.mxu0 0.0
    %488 = vmatprep.subr.mxu0 0.0
    %489 = vmatpush2.msra.mxu0 0.0
    %490 = vmatprep.subr.mxu0 0.0
    %491 = vmatpush2.msra.mxu0 0.0
    %492 = vmatprep.subr.mxu0 0.0
    %493 = vmatpush2.msra.mxu0 0.0
    %494 = vmatprep.subr.mxu0 0.0
    %495 = vmatpush2.msra.mxu0 0.0
    %496 = vmatprep.subr.mxu0 0.0
    %497 = vmatpush2.msra.mxu0 0.0
    %498 = vmatprep.subr.mxu0 0.0
    %499 = vmatpush2.msra.mxu0 0.0
    %500 = vmatprep.subr.mxu0 0.0
    %501 = vmatpush2.msra.mxu0 0.0
    %502 = vmatprep.subr.mxu0 0.0
    %503 = vmatpush2.msra.mxu0 0.0
    %504 = vmatprep.subr.mxu0 0.0
    %505 = vmatpush2.msra.mxu0 0.0
    %506 = vmatprep.subr.mxu0 0.0
    %507 = vmatpush2.msra.mxu0 0.0
    %508 = vmatprep.subr.mxu0 0.0
    %509 = vmatpush2.msra.mxu0 0.0
    %510 = vmatprep.subr.mxu0 0.0
    %511 = vmatpush2.msra.mxu0 0.0
    %512 = vmatprep.subr.mxu0 0.0
    %513 = vmatpush2.msra.mxu0 0.0
    %514 = vmatprep.subr.mxu0 0.0
    %515 = vmatpush2.msra.mxu0 0.0
    %516 = vmatprep.mubr.f32.mxu0 0.0
    %517 = vmatmul.mubr.f32.gmra.mxu0 %v451
    %v518 = vpop.f32.mrf.mxu0
    %v519 = vadd.f32 0.0, %v518
    %v520 = vpop.f32.mrf.mxu0
    %521 = vdwg.mxu0
    %vm522 = vcmp.gt.s32.totalorder %v70, 5
    %v523 = vmul.f32 %v519, %v451
    %v524 = vsel %vm522, %v523, 0.0
    %v525 = vadd.f32 %v449, %v524
    %s526 = scalar_lea.vmem [#allocation2], 24
    %v527 = vld [vmem:[%s526] sm:$0xf]
    %528 = vmatprep.subr.mxu0 0.0
    %529 = vmatpush1.msra.mxu0 %v69
    %530 = vmatprep.subr.mxu0 0.0
    %531 = vmatpush1.msra.mxu0 %v68
    %532 = vmatprep.subr.mxu0 0.0
    %533 = vmatpush1.msra.mxu0 %v67
    %534 = vmatprep.subr.mxu0 0.0
    %535 = vmatpush1.msra.mxu0 %v66
    %536 = vmatprep.subr.mxu0 0.0
    %537 = vmatpush1.msra.mxu0 %v65
    %538 = vmatprep.subr.mxu0 0.0
    %539 = vmatpush1.msra.mxu0 %v64
    %540 = vmatprep.subr.mxu0 0.0
    %541 = vmatpush1.msra.mxu0 %v63
    %542 = vmatprep.subr.mxu0 0.0
    %543 = vmatpush1.msra.mxu0 %v62
    %544 = vmatprep.subr.mxu0 0.0
    %545 = vmatpush1.msra.mxu0 %v61
    %546 = vmatprep.subr.mxu0 0.0
    %547 = vmatpush1.msra.mxu0 %v60
    %548 = vmatprep.subr.mxu0 0.0
    %549 = vmatpush1.msra.mxu0 %v59
    %550 = vmatprep.subr.mxu0 0.0
    %551 = vmatpush1.msra.mxu0 %v58
    %552 = vmatprep.subr.mxu0 0.0
    %553 = vmatpush1.msra.mxu0 %v57
    %554 = vmatprep.subr.mxu0 0.0
    %555 = vmatpush1.msra.mxu0 %v56
    %556 = vmatprep.subr.mxu0 0.0
    %557 = vmatpush1.msra.mxu0 %v55
    %558 = vmatprep.subr.mxu0 0.0
    %559 = vmatpush1.msra.mxu0 %v54
    %560 = vmatprep.subr.mxu0 0.0
    %561 = vmatpush2.msra.mxu0 0.0
    %562 = vmatprep.subr.mxu0 0.0
    %563 = vmatpush2.msra.mxu0 0.0
    %564 = vmatprep.subr.mxu0 0.0
    %565 = vmatpush2.msra.mxu0 0.0
    %566 = vmatprep.subr.mxu0 0.0
    %567 = vmatpush2.msra.mxu0 0.0
    %568 = vmatprep.subr.mxu0 0.0
    %569 = vmatpush2.msra.mxu0 0.0
    %570 = vmatprep.subr.mxu0 0.0
    %571 = vmatpush2.msra.mxu0 0.0
    %572 = vmatprep.subr.mxu0 0.0
    %573 = vmatpush2.msra.mxu0 0.0
    %574 = vmatprep.subr.mxu0 0.0
    %575 = vmatpush2.msra.mxu0 0.0
    %576 = vmatprep.subr.mxu0 0.0
    %577 = vmatpush2.msra.mxu0 0.0
    %578 = vmatprep.subr.mxu0 0.0
    %579 = vmatpush2.msra.mxu0 0.0
    %580 = vmatprep.subr.mxu0 0.0
    %581 = vmatpush2.msra.mxu0 0.0
    %582 = vmatprep.subr.mxu0 0.0
    %583 = vmatpush2.msra.mxu0 0.0
    %584 = vmatprep.subr.mxu0 0.0
    %585 = vmatpush2.msra.mxu0 0.0
    %586 = vmatprep.subr.mxu0 0.0
    %587 = vmatpush2.msra.mxu0 0.0
    %588 = vmatprep.subr.mxu0 0.0
    %589 = vmatpush2.msra.mxu0 0.0
    %590 = vmatprep.subr.mxu0 0.0
    %591 = vmatpush2.msra.mxu0 0.0
    %592 = vmatprep.mubr.f32.mxu0 0.0
    %593 = vmatmul.mubr.f32.gmra.mxu0 %v527
    %v594 = vpop.f32.mrf.mxu0
    %v595 = vadd.f32 0.0, %v594
    %v596 = vpop.f32.mrf.mxu0
    %597 = vdwg.mxu0
    %vm598 = vcmp.gt.s32.totalorder %v70, 6
    %v599 = vmul.f32 %v595, %v527
    %v600 = vsel %vm598, %v599, 0.0
    %v601 = vadd.f32 %v525, %v600
    %s602 = scalar_lea.vmem [#allocation2], 28
    %v603 = vld [vmem:[%s602] sm:$0xf]
    %604 = vmatprep.subr.mxu0 0.0
    %605 = vmatpush1.msra.mxu0 %v69
    %606 = vmatprep.subr.mxu0 0.0
    %607 = vmatpush1.msra.mxu0 %v68
    %608 = vmatprep.subr.mxu0 0.0
    %609 = vmatpush1.msra.mxu0 %v67
    %610 = vmatprep.subr.mxu0 0.0
    %611 = vmatpush1.msra.mxu0 %v66
    %612 = vmatprep.subr.mxu0 0.0
    %613 = vmatpush1.msra.mxu0 %v65
    %614 = vmatprep.subr.mxu0 0.0
    %615 = vmatpush1.msra.mxu0 %v64
    %616 = vmatprep.subr.mxu0 0.0
    %617 = vmatpush1.msra.mxu0 %v63
    %618 = vmatprep.subr.mxu0 0.0
    %619 = vmatpush1.msra.mxu0 %v62
    %620 = vmatprep.subr.mxu0 0.0
    %621 = vmatpush1.msra.mxu0 %v61
    %622 = vmatprep.subr.mxu0 0.0
    %623 = vmatpush1.msra.mxu0 %v60
    %624 = vmatprep.subr.mxu0 0.0
    %625 = vmatpush1.msra.mxu0 %v59
    %626 = vmatprep.subr.mxu0 0.0
    %627 = vmatpush1.msra.mxu0 %v58
    %628 = vmatprep.subr.mxu0 0.0
    %629 = vmatpush1.msra.mxu0 %v57
    %630 = vmatprep.subr.mxu0 0.0
    %631 = vmatpush1.msra.mxu0 %v56
    %632 = vmatprep.subr.mxu0 0.0
    %633 = vmatpush1.msra.mxu0 %v55
    %634 = vmatprep.subr.mxu0 0.0
    %635 = vmatpush1.msra.mxu0 %v54
    %636 = vmatprep.subr.mxu0 0.0
    %637 = vmatpush2.msra.mxu0 0.0
    %638 = vmatprep.subr.mxu0 0.0
    %639 = vmatpush2.msra.mxu0 0.0
    %640 = vmatprep.subr.mxu0 0.0
    %641 = vmatpush2.msra.mxu0 0.0
    %642 = vmatprep.subr.mxu0 0.0
    %643 = vmatpush2.msra.mxu0 0.0
    %644 = vmatprep.subr.mxu0 0.0
    %645 = vmatpush2.msra.mxu0 0.0
    %646 = vmatprep.subr.mxu0 0.0
    %647 = vmatpush2.msra.mxu0 0.0
    %648 = vmatprep.subr.mxu0 0.0
    %649 = vmatpush2.msra.mxu0 0.0
    %650 = vmatprep.subr.mxu0 0.0
    %651 = vmatpush2.msra.mxu0 0.0
    %652 = vmatprep.subr.mxu0 0.0
    %653 = vmatpush2.msra.mxu0 0.0
    %654 = vmatprep.subr.mxu0 0.0
    %655 = vmatpush2.msra.mxu0 0.0
    %656 = vmatprep.subr.mxu0 0.0
    %657 = vmatpush2.msra.mxu0 0.0
    %658 = vmatprep.subr.mxu0 0.0
    %659 = vmatpush2.msra.mxu0 0.0
    %660 = vmatprep.subr.mxu0 0.0
    %661 = vmatpush2.msra.mxu0 0.0
    %662 = vmatprep.subr.mxu0 0.0
    %663 = vmatpush2.msra.mxu0 0.0
    %664 = vmatprep.subr.mxu0 0.0
    %665 = vmatpush2.msra.mxu0 0.0
    %666 = vmatprep.subr.mxu0 0.0
    %667 = vmatpush2.msra.mxu0 0.0
    %668 = vmatprep.mubr.f32.mxu0 0.0
    %669 = vmatmul.mubr.f32.gmra.mxu0 %v603
    %v670 = vpop.f32.mrf.mxu0
    %v671 = vadd.f32 0.0, %v670
    %v672 = vpop.f32.mrf.mxu0
    %673 = vdwg.mxu0
    %vm674 = vcmp.gt.s32.totalorder %v70, 7
    %v675 = vmul.f32 %v671, %v603
    %v676 = vsel %vm674, %v675, 0.0
    %v677 = vadd.f32 %v601, %v676
    %678 = vst [vmem:[#allocation8] sm:$0xf] %v677
    // Predicated region
    $region26: #{tpu_custom_call.1} parent=1 // pred_check
      _
    $region27: #{tpu_custom_call.1} parent=1 // pred_check_branch
      %680 = sbr.rel (0) target = $region29
    $region28: #{tpu_custom_call.1} parent=1 // pred_region
      %s682 = ssub.s32 64, 64
      %683 = vsyncadd [#allocation4], %s682
      %s685 = sshll.u32 [#allocation8], 4
      %s686 = int_to_ptr.vmem [resolvable:$true] %s685
      %688 = dma.vmem_to_hbm [thread:$0]  %s686, 64, %s3, [#allocation4]
    $region29: #{tpu_custom_call.1} parent=1 // pred_fallthru
      _
    // Predicated region
    $region30: #{tpu_custom_call.1} parent=1 // pred_check
      _
    $region31: #{tpu_custom_call.1} parent=1 // pred_check_branch
      %690 = sbr.rel (0) target = $region33
    $region32: #{tpu_custom_call.1} parent=1 // pred_region
      %691 = dma.done [#allocation4], 64
    $region33: #{tpu_custom_call.1} parent=1 // pred_fallthru
      _
    %692 = vsyncpa [#allocation3], 1
    %693 = vsyncpa [#allocation6], 1
    %694 = vsyncpa [#allocation4], 1

</llo_original>
